<compile_context>
chip_gen: v5e
topology: v5e:2x2
jax: 0.10.0
libtpu: 0.0.40
codegen_flags: <defaults>
</compile_context>

<pallas_src>
import functools
import math

import jax
import jax.numpy as jnp
from jax import lax
from jax.experimental import pallas as pl
from jax.experimental.pallas import tpu as pltpu

BN_EPS = 1e-5


def _elu(x):
    # F.elu (alpha=1.0); clamp the exp argument since jnp.where evaluates both sides.
    return jnp.where(x > 0, x, jnp.exp(jnp.minimum(x, 0.0)) - 1.0)


def _mlp_block(h, w1, b1, w2, b2, gamma, beta, ones_row, inv_rows, matmul_dtype):
    """Linear -> ELU -> dropout(p=0, no-op) -> Linear -> ELU -> BatchNorm1d(train)."""
    h = jnp.dot(h.astype(matmul_dtype), w1.astype(matmul_dtype),
                preferred_element_type=jnp.float32) + b1
    h = _elu(h)
    h = jnp.dot(h.astype(matmul_dtype), w2.astype(matmul_dtype),
                preferred_element_type=jnp.float32) + b2
    h = _elu(h)
    # One-pass batch statistics over ALL B*N rows (biased variance, PyTorch
    # training mode).  Column sums go through the MXU (ones(1,R) @ h) in f32,
    # keeping the cross-sublane XLU path out of the kernel entirely.
    col_sum = jnp.dot(ones_row, h, preferred_element_type=jnp.float32)        # (1, F)
    col_sumsq = jnp.dot(ones_row, h * h, preferred_element_type=jnp.float32)  # (1, F)
    mean = col_sum * inv_rows
    var = jnp.maximum(col_sumsq * inv_rows - mean * mean, 0.0)
    return (h - mean) * lax.rsqrt(var + BN_EPS) * gamma + beta


# ---------------------------------------------------------------------------
# One fused, gridless kernel: 3 MLP blocks + fc_out + batched Gram + sigmoid.
# All weights (~KB) and the (B*N, F) activation slab stay resident in VMEM,
# so there is no inter-block HBM traffic and a single kernel launch.
# ---------------------------------------------------------------------------
def _make_encoder_kernel(b_dim, n_nodes, n_out, matmul_dtype):
    rows = b_dim * n_nodes
    inv_rows = 1.0 / float(rows)

    def kernel(x_ref,
               w1a, b1a, w2a, b2a, g1, be1,
               w1b, b1b, w2b, b2b, g2, be2,
               w1c, b1c, w2c, b2c, g3, be3,
               wo_ref, bo_ref,
               out_ref):
        # Hoisted once, shared by all three BN reduces (JAX does not CSE
        # broadcast constants inside the body).
        ones_row = jnp.ones((1, rows), jnp.float32)

        h = x_ref[...]
        h = _mlp_block(h, w1a[...], b1a[...], w2a[...], b2a[...], g1[...], be1[...],
                       ones_row, inv_rows, matmul_dtype)
        h = _mlp_block(h, w1b[...], b1b[...], w2b[...], b2b[...], g2[...], be2[...],
                       ones_row, inv_rows, matmul_dtype)
        h = _mlp_block(h, w1c[...], b1c[...], w2c[...], b2c[...], g3[...], be3[...],
                       ones_row, inv_rows, matmul_dtype)

        # Head: L = h @ Wo + bo over the flat slab (single MXU matmul), then a
        # metadata-only value reshape back to (B, N, n_out) — N is a multiple
        # of 8 (sublane tile), so no relayout / scratch round-trip is needed.
        l_flat = jnp.dot(h.astype(matmul_dtype), wo_ref[...].astype(matmul_dtype),
                         preferred_element_type=jnp.float32) + bo_ref[...]
        l3 = l_flat.reshape(b_dim, n_nodes, n_out)

        # A = sigmoid(L @ L^T) for every batch in one batched MXU contraction
        # on the last axes of both operands (no transpose materialized),
        # stored directly as (B, N, N).  At small N the direct (masked) store
        # beats a lane-dense padded slab + wrapper strip.
        gram = jnp.einsum('bnf,bmf->bnm', l3, l3,
                          preferred_element_type=jnp.float32)
        out_ref[...] = jax.nn.sigmoid(gram).astype(out_ref.dtype)

    return kernel


@functools.partial(jax.jit, static_argnames=("use_bf16_matmul",))
def mlp_encoder(x, params, use_bf16_matmul=None):
    """inputs (B, N, ...) -> A = sigmoid(L @ L^T), shape (B, N, N)."""
    B, N = x.shape[0], x.shape[1]
    flat = x.reshape(B * N, -1).astype(jnp.float32)   # inputs.view(B, N, -1), rows flattened
    p1, p2, p3, (wo, bo) = params
    n_hid, n_out = wo.shape

    if use_bf16_matmul is None:
        # bf16 MXU operands give 2-4x matmul throughput at realistic widths;
        # at the toy width used below stay in f32 so the result remains within
        # 1e-2 of the f32 reference.
        use_bf16_matmul = n_hid >= 128
    matmul_dtype = jnp.bfloat16 if use_bf16_matmul else jnp.float32

    kernel = _make_encoder_kernel(B, N, n_out, matmul_dtype)
    return pl.pallas_call(
        kernel,
        out_shape=jax.ShapeDtypeStruct((B, N, N), jnp.float32),
        compiler_params=pltpu.CompilerParams(
            vmem_limit_bytes=32 * 1024 * 1024),
    )(flat, *p1, *p2, *p3, wo, bo)


# ---------------------------------------------------------------------------
# Parameter init (deterministic; matches the PyTorch module's init. Weights
# are stored pre-transposed to (in, out) so the kernel computes x @ W).
# ---------------------------------------------------------------------------
def init_linear(key, n_in, n_out):
    std = math.sqrt(2.0 / (n_in + n_out))              # xavier_normal
    w = std * jax.random.normal(key, (n_in, n_out), jnp.float32)
    b = jnp.full((1, n_out), 0.1, jnp.float32)
    return w, b


def init_mlp(key, n_in, n_hid, n_out):
    k1, k2 = jax.random.split(key)
    w1, b1 = init_linear(k1, n_in, n_hid)
    w2, b2 = init_linear(k2, n_hid, n_out)
    gamma = jnp.ones((1, n_out), jnp.float32)          # BN weight = 1
    beta = jnp.zeros((1, n_out), jnp.float32)          # BN bias = 0
    return (w1, b1, w2, b2, gamma, beta)


def init_encoder(key, n_in, n_hid, n_out):
    k1, k2, k3, k4 = jax.random.split(key, 4)
    return (
        init_mlp(k1, n_in, n_hid, n_hid),
        init_mlp(k2, n_hid, n_hid, n_hid),
        init_mlp(k3, n_hid, n_hid, n_hid),
        init_linear(k4, n_hid, n_out),
    )


# Pure-JAX reference for a sanity check (two-pass BN variance, all f32).
def ref_encoder(x, params):
    B, N = x.shape[0], x.shape[1]
    h = x.reshape(B * N, -1)

    def blk(h, p):
        w1, b1, w2, b2, g, bt = p
        h = _elu(h @ w1 + b1)
        h = _elu(h @ w2 + b2)
        m = h.mean(0, keepdims=True)
        v = ((h - m) ** 2).mean(0, keepdims=True)
        return (h - m) / jnp.sqrt(v + BN_EPS) * g + bt

    p1, p2, p3, (wo, bo) = params
    h = blk(blk(blk(h, p1), p2), p3)
    L = (h.reshape(B, N, -1) @ wo) + bo
    return jax.nn.sigmoid(jnp.einsum("bnf,bmf->bnm", L, L))


if __name__ == "__main__":
    B, N, T, D = 2, 8, 4, 4                            # input (B, atoms, timesteps, dims)
    n_in, n_hid, n_out = T * D, 32, 8

    key = jax.random.PRNGKey(0)
    kx, kp = jax.random.split(key)
    x = jax.random.normal(kx, (B, N, T, D), jnp.float32)
    params = init_encoder(kp, n_in, n_hid, n_out)

    out = mlp_encoder(x, params)
    out = jax.block_until_ready(out)

    ref = ref_encoder(x, params)
    assert out.shape == (B, N, N)
    assert bool(jnp.all(jnp.isfinite(out)))
    assert bool(jnp.allclose(out, ref, rtol=1e-2, atol=1e-2)), "mismatch vs JAX reference"

    print("KERNEL_OK")
</pallas_src>

<mosaic_0001>
module attributes {stable_mosaic.version = 11 : i64} {
  func.func @kernel(%arg0: memref<16x16xf32, #tpu.memory_space<vmem>>, %arg1: memref<16x32xf32, #tpu.memory_space<vmem>>, %arg2: memref<1x32xf32, #tpu.memory_space<vmem>>, %arg3: memref<32x32xf32, #tpu.memory_space<vmem>>, %arg4: memref<1x32xf32, #tpu.memory_space<vmem>>, %arg5: memref<1x32xf32, #tpu.memory_space<vmem>>, %arg6: memref<1x32xf32, #tpu.memory_space<vmem>>, %arg7: memref<32x32xf32, #tpu.memory_space<vmem>>, %arg8: memref<1x32xf32, #tpu.memory_space<vmem>>, %arg9: memref<32x32xf32, #tpu.memory_space<vmem>>, %arg10: memref<1x32xf32, #tpu.memory_space<vmem>>, %arg11: memref<1x32xf32, #tpu.memory_space<vmem>>, %arg12: memref<1x32xf32, #tpu.memory_space<vmem>>, %arg13: memref<32x32xf32, #tpu.memory_space<vmem>>, %arg14: memref<1x32xf32, #tpu.memory_space<vmem>>, %arg15: memref<32x32xf32, #tpu.memory_space<vmem>>, %arg16: memref<1x32xf32, #tpu.memory_space<vmem>>, %arg17: memref<1x32xf32, #tpu.memory_space<vmem>>, %arg18: memref<1x32xf32, #tpu.memory_space<vmem>>, %arg19: memref<32x8xf32, #tpu.memory_space<vmem>>, %arg20: memref<1x8xf32, #tpu.memory_space<vmem>>, %arg21: memref<2x8x8xf32, #tpu.memory_space<vmem>>) attributes {dimension_semantics = [], scalar_prefetch = 0 : i64, scratch_operands = 0 : i64, tpu.core_type = #tpu.core_type<tc>} {
    %cst = arith.constant 1.000000e+00 : f32
    %0 = vector.broadcast %cst : f32 to vector<1x16xf32>
    %c0 = arith.constant 0 : index
    %c0_0 = arith.constant 0 : index
    %1 = vector.load %arg0[%c0, %c0_0] : memref<16x16xf32, #tpu.memory_space<vmem>>, vector<16x16xf32>
    %c0_1 = arith.constant 0 : index
    %c0_2 = arith.constant 0 : index
    %2 = vector.load %arg1[%c0_1, %c0_2] : memref<16x32xf32, #tpu.memory_space<vmem>>, vector<16x32xf32>
    %c0_3 = arith.constant 0 : index
    %c0_4 = arith.constant 0 : index
    %3 = vector.load %arg2[%c0_3, %c0_4] : memref<1x32xf32, #tpu.memory_space<vmem>>, vector<1x32xf32>
    %c0_5 = arith.constant 0 : index
    %c0_6 = arith.constant 0 : index
    %4 = vector.load %arg3[%c0_5, %c0_6] : memref<32x32xf32, #tpu.memory_space<vmem>>, vector<32x32xf32>
    %c0_7 = arith.constant 0 : index
    %c0_8 = arith.constant 0 : index
    %5 = vector.load %arg4[%c0_7, %c0_8] : memref<1x32xf32, #tpu.memory_space<vmem>>, vector<1x32xf32>
    %c0_9 = arith.constant 0 : index
    %c0_10 = arith.constant 0 : index
    %6 = vector.load %arg5[%c0_9, %c0_10] : memref<1x32xf32, #tpu.memory_space<vmem>>, vector<1x32xf32>
    %c0_11 = arith.constant 0 : index
    %c0_12 = arith.constant 0 : index
    %7 = vector.load %arg6[%c0_11, %c0_12] : memref<1x32xf32, #tpu.memory_space<vmem>>, vector<1x32xf32>
    %cst_13 = arith.constant dense<0.000000e+00> : vector<16x32xf32>
    %8 = tpu.matmul %1, %2, %cst_13 {dimension_numbers = #tpu.dot_dimension_numbers<[1], [0], [0], [1], [0, 0, 1, 1], [], []>} : vector<16x16xf32>, vector<16x32xf32>, vector<16x32xf32> -> vector<16x32xf32>
    %9 = vector.broadcast %3 : vector<1x32xf32> to vector<16x32xf32>
    %10 = arith.addf %8, %9 : vector<16x32xf32>
    %cst_14 = arith.constant 0.000000e+00 : f32
    %11 = vector.broadcast %cst_14 : f32 to vector<16x32xf32>
    %12 = arith.cmpf ogt, %10, %11 : vector<16x32xf32>
    %cst_15 = arith.constant 0.000000e+00 : f32
    %13 = vector.broadcast %cst_15 : f32 to vector<16x32xf32>
    %14 = arith.minimumf %10, %13 : vector<16x32xf32>
    %15 = math.exp %14 : vector<16x32xf32>
    %cst_16 = arith.constant 1.000000e+00 : f32
    %16 = vector.broadcast %cst_16 : f32 to vector<16x32xf32>
    %17 = arith.subf %15, %16 : vector<16x32xf32>
    %18 = arith.select %12, %10, %17 : vector<16x32xi1>, vector<16x32xf32>
    %cst_17 = arith.constant dense<0.000000e+00> : vector<16x32xf32>
    %19 = tpu.matmul %18, %4, %cst_17 {dimension_numbers = #tpu.dot_dimension_numbers<[1], [0], [0], [1], [0, 0, 1, 1], [], []>} : vector<16x32xf32>, vector<32x32xf32>, vector<16x32xf32> -> vector<16x32xf32>
    %20 = vector.broadcast %5 : vector<1x32xf32> to vector<16x32xf32>
    %21 = arith.addf %19, %20 : vector<16x32xf32>
    %cst_18 = arith.constant 0.000000e+00 : f32
    %22 = vector.broadcast %cst_18 : f32 to vector<16x32xf32>
    %23 = arith.cmpf ogt, %21, %22 : vector<16x32xf32>
    %cst_19 = arith.constant 0.000000e+00 : f32
    %24 = vector.broadcast %cst_19 : f32 to vector<16x32xf32>
    %25 = arith.minimumf %21, %24 : vector<16x32xf32>
    %26 = math.exp %25 : vector<16x32xf32>
    %cst_20 = arith.constant 1.000000e+00 : f32
    %27 = vector.broadcast %cst_20 : f32 to vector<16x32xf32>
    %28 = arith.subf %26, %27 : vector<16x32xf32>
    %29 = arith.select %23, %21, %28 : vector<16x32xi1>, vector<16x32xf32>
    %cst_21 = arith.constant dense<0.000000e+00> : vector<1x32xf32>
    %30 = tpu.matmul %0, %29, %cst_21 {dimension_numbers = #tpu.dot_dimension_numbers<[1], [0], [0], [1], [0, 0, 1, 1], [], []>} : vector<1x16xf32>, vector<16x32xf32>, vector<1x32xf32> -> vector<1x32xf32>
    %31 = arith.mulf %29, %29 : vector<16x32xf32>
    %cst_22 = arith.constant dense<0.000000e+00> : vector<1x32xf32>
    %32 = tpu.matmul %0, %31, %cst_22 {dimension_numbers = #tpu.dot_dimension_numbers<[1], [0], [0], [1], [0, 0, 1, 1], [], []>} : vector<1x16xf32>, vector<16x32xf32>, vector<1x32xf32> -> vector<1x32xf32>
    %cst_23 = arith.constant 6.250000e-02 : f32
    %33 = vector.broadcast %cst_23 : f32 to vector<1x32xf32>
    %34 = arith.mulf %30, %33 : vector<1x32xf32>
    %cst_24 = arith.constant 6.250000e-02 : f32
    %35 = vector.broadcast %cst_24 : f32 to vector<1x32xf32>
    %36 = arith.mulf %32, %35 : vector<1x32xf32>
    %37 = arith.mulf %34, %34 : vector<1x32xf32>
    %38 = arith.subf %36, %37 : vector<1x32xf32>
    %cst_25 = arith.constant 0.000000e+00 : f32
    %39 = vector.broadcast %cst_25 : f32 to vector<1x32xf32>
    %40 = arith.maximumf %38, %39 : vector<1x32xf32>
    %41 = vector.broadcast %34 : vector<1x32xf32> to vector<16x32xf32>
    %42 = arith.subf %29, %41 : vector<16x32xf32>
    %cst_26 = arith.constant 9.99999974E-6 : f32
    %43 = vector.broadcast %cst_26 : f32 to vector<1x32xf32>
    %44 = arith.addf %40, %43 : vector<1x32xf32>
    %45 = math.rsqrt %44 : vector<1x32xf32>
    %46 = vector.broadcast %45 : vector<1x32xf32> to vector<16x32xf32>
    %47 = arith.mulf %42, %46 : vector<16x32xf32>
    %48 = vector.broadcast %6 : vector<1x32xf32> to vector<16x32xf32>
    %49 = arith.mulf %47, %48 : vector<16x32xf32>
    %50 = vector.broadcast %7 : vector<1x32xf32> to vector<16x32xf32>
    %51 = arith.addf %49, %50 : vector<16x32xf32>
    %c0_27 = arith.constant 0 : index
    %c0_28 = arith.constant 0 : index
    %52 = vector.load %arg7[%c0_27, %c0_28] : memref<32x32xf32, #tpu.memory_space<vmem>>, vector<32x32xf32>
    %c0_29 = arith.constant 0 : index
    %c0_30 = arith.constant 0 : index
    %53 = vector.load %arg8[%c0_29, %c0_30] : memref<1x32xf32, #tpu.memory_space<vmem>>, vector<1x32xf32>
    %c0_31 = arith.constant 0 : index
    %c0_32 = arith.constant 0 : index
    %54 = vector.load %arg9[%c0_31, %c0_32] : memref<32x32xf32, #tpu.memory_space<vmem>>, vector<32x32xf32>
    %c0_33 = arith.constant 0 : index
    %c0_34 = arith.constant 0 : index
    %55 = vector.load %arg10[%c0_33, %c0_34] : memref<1x32xf32, #tpu.memory_space<vmem>>, vector<1x32xf32>
    %c0_35 = arith.constant 0 : index
    %c0_36 = arith.constant 0 : index
    %56 = vector.load %arg11[%c0_35, %c0_36] : memref<1x32xf32, #tpu.memory_space<vmem>>, vector<1x32xf32>
    %c0_37 = arith.constant 0 : index
    %c0_38 = arith.constant 0 : index
    %57 = vector.load %arg12[%c0_37, %c0_38] : memref<1x32xf32, #tpu.memory_space<vmem>>, vector<1x32xf32>
    %cst_39 = arith.constant dense<0.000000e+00> : vector<16x32xf32>
    %58 = tpu.matmul %51, %52, %cst_39 {dimension_numbers = #tpu.dot_dimension_numbers<[1], [0], [0], [1], [0, 0, 1, 1], [], []>} : vector<16x32xf32>, vector<32x32xf32>, vector<16x32xf32> -> vector<16x32xf32>
    %59 = vector.broadcast %53 : vector<1x32xf32> to vector<16x32xf32>
    %60 = arith.addf %58, %59 : vector<16x32xf32>
    %cst_40 = arith.constant 0.000000e+00 : f32
    %61 = vector.broadcast %cst_40 : f32 to vector<16x32xf32>
    %62 = arith.cmpf ogt, %60, %61 : vector<16x32xf32>
    %cst_41 = arith.constant 0.000000e+00 : f32
    %63 = vector.broadcast %cst_41 : f32 to vector<16x32xf32>
    %64 = arith.minimumf %60, %63 : vector<16x32xf32>
    %65 = math.exp %64 : vector<16x32xf32>
    %cst_42 = arith.constant 1.000000e+00 : f32
    %66 = vector.broadcast %cst_42 : f32 to vector<16x32xf32>
    %67 = arith.subf %65, %66 : vector<16x32xf32>
    %68 = arith.select %62, %60, %67 : vector<16x32xi1>, vector<16x32xf32>
    %cst_43 = arith.constant dense<0.000000e+00> : vector<16x32xf32>
    %69 = tpu.matmul %68, %54, %cst_43 {dimension_numbers = #tpu.dot_dimension_numbers<[1], [0], [0], [1], [0, 0, 1, 1], [], []>} : vector<16x32xf32>, vector<32x32xf32>, vector<16x32xf32> -> vector<16x32xf32>
    %70 = vector.broadcast %55 : vector<1x32xf32> to vector<16x32xf32>
    %71 = arith.addf %69, %70 : vector<16x32xf32>
    %cst_44 = arith.constant 0.000000e+00 : f32
    %72 = vector.broadcast %cst_44 : f32 to vector<16x32xf32>
    %73 = arith.cmpf ogt, %71, %72 : vector<16x32xf32>
    %cst_45 = arith.constant 0.000000e+00 : f32
    %74 = vector.broadcast %cst_45 : f32 to vector<16x32xf32>
    %75 = arith.minimumf %71, %74 : vector<16x32xf32>
    %76 = math.exp %75 : vector<16x32xf32>
    %cst_46 = arith.constant 1.000000e+00 : f32
    %77 = vector.broadcast %cst_46 : f32 to vector<16x32xf32>
    %78 = arith.subf %76, %77 : vector<16x32xf32>
    %79 = arith.select %73, %71, %78 : vector<16x32xi1>, vector<16x32xf32>
    %cst_47 = arith.constant dense<0.000000e+00> : vector<1x32xf32>
    %80 = tpu.matmul %0, %79, %cst_47 {dimension_numbers = #tpu.dot_dimension_numbers<[1], [0], [0], [1], [0, 0, 1, 1], [], []>} : vector<1x16xf32>, vector<16x32xf32>, vector<1x32xf32> -> vector<1x32xf32>
    %81 = arith.mulf %79, %79 : vector<16x32xf32>
    %cst_48 = arith.constant dense<0.000000e+00> : vector<1x32xf32>
    %82 = tpu.matmul %0, %81, %cst_48 {dimension_numbers = #tpu.dot_dimension_numbers<[1], [0], [0], [1], [0, 0, 1, 1], [], []>} : vector<1x16xf32>, vector<16x32xf32>, vector<1x32xf32> -> vector<1x32xf32>
    %cst_49 = arith.constant 6.250000e-02 : f32
    %83 = vector.broadcast %cst_49 : f32 to vector<1x32xf32>
    %84 = arith.mulf %80, %83 : vector<1x32xf32>
    %cst_50 = arith.constant 6.250000e-02 : f32
    %85 = vector.broadcast %cst_50 : f32 to vector<1x32xf32>
    %86 = arith.mulf %82, %85 : vector<1x32xf32>
    %87 = arith.mulf %84, %84 : vector<1x32xf32>
    %88 = arith.subf %86, %87 : vector<1x32xf32>
    %cst_51 = arith.constant 0.000000e+00 : f32
    %89 = vector.broadcast %cst_51 : f32 to vector<1x32xf32>
    %90 = arith.maximumf %88, %89 : vector<1x32xf32>
    %91 = vector.broadcast %84 : vector<1x32xf32> to vector<16x32xf32>
    %92 = arith.subf %79, %91 : vector<16x32xf32>
    %cst_52 = arith.constant 9.99999974E-6 : f32
    %93 = vector.broadcast %cst_52 : f32 to vector<1x32xf32>
    %94 = arith.addf %90, %93 : vector<1x32xf32>
    %95 = math.rsqrt %94 : vector<1x32xf32>
    %96 = vector.broadcast %95 : vector<1x32xf32> to vector<16x32xf32>
    %97 = arith.mulf %92, %96 : vector<16x32xf32>
    %98 = vector.broadcast %56 : vector<1x32xf32> to vector<16x32xf32>
    %99 = arith.mulf %97, %98 : vector<16x32xf32>
    %100 = vector.broadcast %57 : vector<1x32xf32> to vector<16x32xf32>
    %101 = arith.addf %99, %100 : vector<16x32xf32>
    %c0_53 = arith.constant 0 : index
    %c0_54 = arith.constant 0 : index
    %102 = vector.load %arg13[%c0_53, %c0_54] : memref<32x32xf32, #tpu.memory_space<vmem>>, vector<32x32xf32>
    %c0_55 = arith.constant 0 : index
    %c0_56 = arith.constant 0 : index
    %103 = vector.load %arg14[%c0_55, %c0_56] : memref<1x32xf32, #tpu.memory_space<vmem>>, vector<1x32xf32>
    %c0_57 = arith.constant 0 : index
    %c0_58 = arith.constant 0 : index
    %104 = vector.load %arg15[%c0_57, %c0_58] : memref<32x32xf32, #tpu.memory_space<vmem>>, vector<32x32xf32>
    %c0_59 = arith.constant 0 : index
    %c0_60 = arith.constant 0 : index
    %105 = vector.load %arg16[%c0_59, %c0_60] : memref<1x32xf32, #tpu.memory_space<vmem>>, vector<1x32xf32>
    %c0_61 = arith.constant 0 : index
    %c0_62 = arith.constant 0 : index
    %106 = vector.load %arg17[%c0_61, %c0_62] : memref<1x32xf32, #tpu.memory_space<vmem>>, vector<1x32xf32>
    %c0_63 = arith.constant 0 : index
    %c0_64 = arith.constant 0 : index
    %107 = vector.load %arg18[%c0_63, %c0_64] : memref<1x32xf32, #tpu.memory_space<vmem>>, vector<1x32xf32>
    %cst_65 = arith.constant dense<0.000000e+00> : vector<16x32xf32>
    %108 = tpu.matmul %101, %102, %cst_65 {dimension_numbers = #tpu.dot_dimension_numbers<[1], [0], [0], [1], [0, 0, 1, 1], [], []>} : vector<16x32xf32>, vector<32x32xf32>, vector<16x32xf32> -> vector<16x32xf32>
    %109 = vector.broadcast %103 : vector<1x32xf32> to vector<16x32xf32>
    %110 = arith.addf %108, %109 : vector<16x32xf32>
    %cst_66 = arith.constant 0.000000e+00 : f32
    %111 = vector.broadcast %cst_66 : f32 to vector<16x32xf32>
    %112 = arith.cmpf ogt, %110, %111 : vector<16x32xf32>
    %cst_67 = arith.constant 0.000000e+00 : f32
    %113 = vector.broadcast %cst_67 : f32 to vector<16x32xf32>
    %114 = arith.minimumf %110, %113 : vector<16x32xf32>
    %115 = math.exp %114 : vector<16x32xf32>
    %cst_68 = arith.constant 1.000000e+00 : f32
    %116 = vector.broadcast %cst_68 : f32 to vector<16x32xf32>
    %117 = arith.subf %115, %116 : vector<16x32xf32>
    %118 = arith.select %112, %110, %117 : vector<16x32xi1>, vector<16x32xf32>
    %cst_69 = arith.constant dense<0.000000e+00> : vector<16x32xf32>
    %119 = tpu.matmul %118, %104, %cst_69 {dimension_numbers = #tpu.dot_dimension_numbers<[1], [0], [0], [1], [0, 0, 1, 1], [], []>} : vector<16x32xf32>, vector<32x32xf32>, vector<16x32xf32> -> vector<16x32xf32>
    %120 = vector.broadcast %105 : vector<1x32xf32> to vector<16x32xf32>
    %121 = arith.addf %119, %120 : vector<16x32xf32>
    %cst_70 = arith.constant 0.000000e+00 : f32
    %122 = vector.broadcast %cst_70 : f32 to vector<16x32xf32>
    %123 = arith.cmpf ogt, %121, %122 : vector<16x32xf32>
    %cst_71 = arith.constant 0.000000e+00 : f32
    %124 = vector.broadcast %cst_71 : f32 to vector<16x32xf32>
    %125 = arith.minimumf %121, %124 : vector<16x32xf32>
    %126 = math.exp %125 : vector<16x32xf32>
    %cst_72 = arith.constant 1.000000e+00 : f32
    %127 = vector.broadcast %cst_72 : f32 to vector<16x32xf32>
    %128 = arith.subf %126, %127 : vector<16x32xf32>
    %129 = arith.select %123, %121, %128 : vector<16x32xi1>, vector<16x32xf32>
    %cst_73 = arith.constant dense<0.000000e+00> : vector<1x32xf32>
    %130 = tpu.matmul %0, %129, %cst_73 {dimension_numbers = #tpu.dot_dimension_numbers<[1], [0], [0], [1], [0, 0, 1, 1], [], []>} : vector<1x16xf32>, vector<16x32xf32>, vector<1x32xf32> -> vector<1x32xf32>
    %131 = arith.mulf %129, %129 : vector<16x32xf32>
    %cst_74 = arith.constant dense<0.000000e+00> : vector<1x32xf32>
    %132 = tpu.matmul %0, %131, %cst_74 {dimension_numbers = #tpu.dot_dimension_numbers<[1], [0], [0], [1], [0, 0, 1, 1], [], []>} : vector<1x16xf32>, vector<16x32xf32>, vector<1x32xf32> -> vector<1x32xf32>
    %cst_75 = arith.constant 6.250000e-02 : f32
    %133 = vector.broadcast %cst_75 : f32 to vector<1x32xf32>
    %134 = arith.mulf %130, %133 : vector<1x32xf32>
    %cst_76 = arith.constant 6.250000e-02 : f32
    %135 = vector.broadcast %cst_76 : f32 to vector<1x32xf32>
    %136 = arith.mulf %132, %135 : vector<1x32xf32>
    %137 = arith.mulf %134, %134 : vector<1x32xf32>
    %138 = arith.subf %136, %137 : vector<1x32xf32>
    %cst_77 = arith.constant 0.000000e+00 : f32
    %139 = vector.broadcast %cst_77 : f32 to vector<1x32xf32>
    %140 = arith.maximumf %138, %139 : vector<1x32xf32>
    %141 = vector.broadcast %134 : vector<1x32xf32> to vector<16x32xf32>
    %142 = arith.subf %129, %141 : vector<16x32xf32>
    %cst_78 = arith.constant 9.99999974E-6 : f32
    %143 = vector.broadcast %cst_78 : f32 to vector<1x32xf32>
    %144 = arith.addf %140, %143 : vector<1x32xf32>
    %145 = math.rsqrt %144 : vector<1x32xf32>
    %146 = vector.broadcast %145 : vector<1x32xf32> to vector<16x32xf32>
    %147 = arith.mulf %142, %146 : vector<16x32xf32>
    %148 = vector.broadcast %106 : vector<1x32xf32> to vector<16x32xf32>
    %149 = arith.mulf %147, %148 : vector<16x32xf32>
    %150 = vector.broadcast %107 : vector<1x32xf32> to vector<16x32xf32>
    %151 = arith.addf %149, %150 : vector<16x32xf32>
    %c0_79 = arith.constant 0 : index
    %c0_80 = arith.constant 0 : index
    %152 = vector.load %arg19[%c0_79, %c0_80] : memref<32x8xf32, #tpu.memory_space<vmem>>, vector<32x8xf32>
    %cst_81 = arith.constant dense<0.000000e+00> : vector<16x8xf32>
    %153 = tpu.matmul %151, %152, %cst_81 {dimension_numbers = #tpu.dot_dimension_numbers<[1], [0], [0], [1], [0, 0, 1, 1], [], []>} : vector<16x32xf32>, vector<32x8xf32>, vector<16x8xf32> -> vector<16x8xf32>
    %c0_82 = arith.constant 0 : index
    %c0_83 = arith.constant 0 : index
    %154 = vector.load %arg20[%c0_82, %c0_83] : memref<1x8xf32, #tpu.memory_space<vmem>>, vector<1x8xf32>
    %155 = vector.broadcast %154 : vector<1x8xf32> to vector<16x8xf32>
    %156 = arith.addf %153, %155 : vector<16x8xf32>
    %157 = vector.shape_cast %156 : vector<16x8xf32> to vector<2x8x8xf32>
    "tpu.trace_start"() <{level = 10 : i32, message = "bnf,bmf->bnm"}> : () -> ()
    %cst_84 = arith.constant dense<0.000000e+00> : vector<2x8x8xf32>
    %158 = tpu.matmul %157, %157, %cst_84 {dimension_numbers = #tpu.dot_dimension_numbers<[2], [2], [1], [1], [0, 0, 0, 1, 1, 1], [0], [0]>} : vector<2x8x8xf32>, vector<2x8x8xf32>, vector<2x8x8xf32> -> vector<2x8x8xf32>
    "tpu.trace_stop"() : () -> ()
    %159 = arith.negf %158 : vector<2x8x8xf32>
    %160 = math.exp %159 : vector<2x8x8xf32>
    %cst_85 = arith.constant 1.000000e+00 : f32
    %161 = vector.broadcast %cst_85 : f32 to vector<2x8x8xf32>
    %162 = arith.addf %161, %160 : vector<2x8x8xf32>
    %163 = arith.divf %161, %162 : vector<2x8x8xf32>
    %c0_86 = arith.constant 0 : index
    %c0_87 = arith.constant 0 : index
    %c0_88 = arith.constant 0 : index
    %164 = vector.load %arg21[%c0_86, %c0_87, %c0_88] : memref<2x8x8xf32, #tpu.memory_space<vmem>>, vector<2x8x8xf32>
    tpu.vector_store %arg21[%c0_86, %c0_87, %c0_88], %163 {strides = array<i32>} : memref<2x8x8xf32, #tpu.memory_space<vmem>>, vector<2x8x8xf32>,
    return
  }
}

</mosaic_0001>

<llo_original>
// kernel: mlp_encoder.1
$region0: #{mlp_encoder.1}
  #allocation0 [shape = 'u32[]', space=smem, size = 0x4, offset = 0x4, fixed_abs, tag = 'smem constant byte address 0x4 - core index']
  #allocation1 [shape = 'u32[72,128]{1,0:T(1,128)}', space=vmem, size = 0x9000, scoped, tag = 'internal scratch']
  %s0 = inlined_call_operand.vmem [shape: f32[16,16], index: 0, kind: input, shape index: {}]
  %s1 = inlined_call_operand.vmem [shape: f32[16,32], index: 1, kind: input, shape index: {}]
  %s2 = inlined_call_operand.vmem [shape: f32[1,32], index: 2, kind: input, shape index: {}]
  %s3 = inlined_call_operand.vmem [shape: f32[32,32], index: 3, kind: input, shape index: {}]
  %s4 = inlined_call_operand.vmem [shape: f32[1,32], index: 4, kind: input, shape index: {}]
  %s5 = inlined_call_operand.vmem [shape: f32[1,32], index: 5, kind: input, shape index: {}]
  %s6 = inlined_call_operand.vmem [shape: f32[1,32], index: 6, kind: input, shape index: {}]
  %s7 = inlined_call_operand.vmem [shape: f32[32,32], index: 7, kind: input, shape index: {}]
  %s8 = inlined_call_operand.vmem [shape: f32[1,32], index: 8, kind: input, shape index: {}]
  %s9 = inlined_call_operand.vmem [shape: f32[32,32], index: 9, kind: input, shape index: {}]
  %s10 = inlined_call_operand.vmem [shape: f32[1,32], index: 10, kind: input, shape index: {}]
  %s11 = inlined_call_operand.vmem [shape: f32[1,32], index: 11, kind: input, shape index: {}]
  %s12 = inlined_call_operand.vmem [shape: f32[1,32], index: 12, kind: input, shape index: {}]
  %s13 = inlined_call_operand.vmem [shape: f32[32,32], index: 13, kind: input, shape index: {}]
  %s14 = inlined_call_operand.vmem [shape: f32[1,32], index: 14, kind: input, shape index: {}]
  %s15 = inlined_call_operand.vmem [shape: f32[32,32], index: 15, kind: input, shape index: {}]
  %s16 = inlined_call_operand.vmem [shape: f32[1,32], index: 16, kind: input, shape index: {}]
  %s17 = inlined_call_operand.vmem [shape: f32[1,32], index: 17, kind: input, shape index: {}]
  %s18 = inlined_call_operand.vmem [shape: f32[1,32], index: 18, kind: input, shape index: {}]
  %s19 = inlined_call_operand.vmem [shape: f32[32,8], index: 19, kind: input, shape index: {}]
  %s20 = inlined_call_operand.vmem [shape: f32[1,8], index: 20, kind: input, shape index: {}]
  %s21 = inlined_call_operand.hbm [shape: f32[2,8,8], index: 21, kind: output, shape index: {}]
  %s22 = sld [smem:[#allocation0]]
  $region94: #{mlp_encoder.1} parent=0
    _
  %s24 = ssub.s32 1, %s22
  %s25 = scalar_select 0, %s24, %s22
  $region1: #{mlp_encoder.1} parent=0
    #allocation2 [shape = 'u8[8192]{0}', space=vmem, size = 0x2000, scoped, tag = 'output window, operand 0, single buffered']
    #allocation3 [shape = 's32[1]{0}', space=sflag, size = 0x4, scoped, tag = 'scoped memory for mlp_encoder.1']
    %26 = vsyncpa [#allocation3], 0
    // Predicated region
    $region2: #{mlp_encoder.1} parent=1 // pred_check
      _
    $region3: #{mlp_encoder.1} parent=1 // pred_check_branch
      %28 = sbr.rel (0) target = $region5
    $region4: #{mlp_encoder.1} parent=1 // pred_region
      _
    $region5: #{mlp_encoder.1} parent=1 // pred_fallthru
      _
    // Predicated region
    $region6: #{mlp_encoder.1} parent=1 // pred_check
      _
    $region7: #{mlp_encoder.1} parent=1 // pred_check_branch
      %30 = sbr.rel (0) target = $region9
    $region8: #{mlp_encoder.1} parent=1 // pred_region
      _
    $region9: #{mlp_encoder.1} parent=1 // pred_fallthru
      _
    // Predicated region
    $region10: #{mlp_encoder.1} parent=1 // pred_check
      _
    $region11: #{mlp_encoder.1} parent=1 // pred_check_branch
      %32 = sbr.rel (0) target = $region13
    $region12: #{mlp_encoder.1} parent=1 // pred_region
      _
    $region13: #{mlp_encoder.1} parent=1 // pred_fallthru
      _
    // Predicated region
    $region14: #{mlp_encoder.1} parent=1 // pred_check
      _
    $region15: #{mlp_encoder.1} parent=1 // pred_check_branch
      %34 = sbr.rel (0) target = $region17
    $region16: #{mlp_encoder.1} parent=1 // pred_region
      _
    $region17: #{mlp_encoder.1} parent=1 // pred_fallthru
      _
    // Predicated region
    $region18: #{mlp_encoder.1} parent=1 // pred_check
      _
    $region19: #{mlp_encoder.1} parent=1 // pred_check_branch
      %36 = sbr.rel (0) target = $region21
    $region20: #{mlp_encoder.1} parent=1 // pred_region
      _
    $region21: #{mlp_encoder.1} parent=1 // pred_fallthru
      _
    // Predicated region
    $region22: #{mlp_encoder.1} parent=1 // pred_check
      _
    $region23: #{mlp_encoder.1} parent=1 // pred_check_branch
      %38 = sbr.rel (0) target = $region25
    $region24: #{mlp_encoder.1} parent=1 // pred_region
      _
    $region25: #{mlp_encoder.1} parent=1 // pred_fallthru
      _
    // Predicated region
    $region26: #{mlp_encoder.1} parent=1 // pred_check
      _
    $region27: #{mlp_encoder.1} parent=1 // pred_check_branch
      %40 = sbr.rel (0) target = $region29
    $region28: #{mlp_encoder.1} parent=1 // pred_region
      _
    $region29: #{mlp_encoder.1} parent=1 // pred_fallthru
      _
    // Predicated region
    $region30: #{mlp_encoder.1} parent=1 // pred_check
      _
    $region31: #{mlp_encoder.1} parent=1 // pred_check_branch
      %42 = sbr.rel (0) target = $region33
    $region32: #{mlp_encoder.1} parent=1 // pred_region
      _
    $region33: #{mlp_encoder.1} parent=1 // pred_fallthru
      _
    // Predicated region
    $region34: #{mlp_encoder.1} parent=1 // pred_check
      _
    $region35: #{mlp_encoder.1} parent=1 // pred_check_branch
      %44 = sbr.rel (0) target = $region37
    $region36: #{mlp_encoder.1} parent=1 // pred_region
      _
    $region37: #{mlp_encoder.1} parent=1 // pred_fallthru
      _
    // Predicated region
    $region38: #{mlp_encoder.1} parent=1 // pred_check
      _
    $region39: #{mlp_encoder.1} parent=1 // pred_check_branch
      %46 = sbr.rel (0) target = $region41
    $region40: #{mlp_encoder.1} parent=1 // pred_region
      _
    $region41: #{mlp_encoder.1} parent=1 // pred_fallthru
      _
    // Predicated region
    $region42: #{mlp_encoder.1} parent=1 // pred_check
      _
    $region43: #{mlp_encoder.1} parent=1 // pred_check_branch
      %48 = sbr.rel (0) target = $region45
    $region44: #{mlp_encoder.1} parent=1 // pred_region
      _
    $region45: #{mlp_encoder.1} parent=1 // pred_fallthru
      _
    // Predicated region
    $region46: #{mlp_encoder.1} parent=1 // pred_check
      _
    $region47: #{mlp_encoder.1} parent=1 // pred_check_branch
      %50 = sbr.rel (0) target = $region49
    $region48: #{mlp_encoder.1} parent=1 // pred_region
      _
    $region49: #{mlp_encoder.1} parent=1 // pred_fallthru
      _
    // Predicated region
    $region50: #{mlp_encoder.1} parent=1 // pred_check
      _
    $region51: #{mlp_encoder.1} parent=1 // pred_check_branch
      %52 = sbr.rel (0) target = $region53
    $region52: #{mlp_encoder.1} parent=1 // pred_region
      _
    $region53: #{mlp_encoder.1} parent=1 // pred_fallthru
      _
    // Predicated region
    $region54: #{mlp_encoder.1} parent=1 // pred_check
      _
    $region55: #{mlp_encoder.1} parent=1 // pred_check_branch
      %54 = sbr.rel (0) target = $region57
    $region56: #{mlp_encoder.1} parent=1 // pred_region
      _
    $region57: #{mlp_encoder.1} parent=1 // pred_fallthru
      _
    // Predicated region
    $region58: #{mlp_encoder.1} parent=1 // pred_check
      _
    $region59: #{mlp_encoder.1} parent=1 // pred_check_branch
      %56 = sbr.rel (0) target = $region61
    $region60: #{mlp_encoder.1} parent=1 // pred_region
      _
    $region61: #{mlp_encoder.1} parent=1 // pred_fallthru
      _
    // Predicated region
    $region62: #{mlp_encoder.1} parent=1 // pred_check
      _
    $region63: #{mlp_encoder.1} parent=1 // pred_check_branch
      %58 = sbr.rel (0) target = $region65
    $region64: #{mlp_encoder.1} parent=1 // pred_region
      _
    $region65: #{mlp_encoder.1} parent=1 // pred_fallthru
      _
    // Predicated region
    $region66: #{mlp_encoder.1} parent=1 // pred_check
      _
    $region67: #{mlp_encoder.1} parent=1 // pred_check_branch
      %60 = sbr.rel (0) target = $region69
    $region68: #{mlp_encoder.1} parent=1 // pred_region
      _
    $region69: #{mlp_encoder.1} parent=1 // pred_fallthru
      _
    // Predicated region
    $region70: #{mlp_encoder.1} parent=1 // pred_check
      _
    $region71: #{mlp_encoder.1} parent=1 // pred_check_branch
      %62 = sbr.rel (0) target = $region73
    $region72: #{mlp_encoder.1} parent=1 // pred_region
      _
    $region73: #{mlp_encoder.1} parent=1 // pred_fallthru
      _
    // Predicated region
    $region74: #{mlp_encoder.1} parent=1 // pred_check
      _
    $region75: #{mlp_encoder.1} parent=1 // pred_check_branch
      %64 = sbr.rel (0) target = $region77
    $region76: #{mlp_encoder.1} parent=1 // pred_region
      _
    $region77: #{mlp_encoder.1} parent=1 // pred_fallthru
      _
    // Predicated region
    $region78: #{mlp_encoder.1} parent=1 // pred_check
      _
    $region79: #{mlp_encoder.1} parent=1 // pred_check_branch
      %66 = sbr.rel (0) target = $region81
    $region80: #{mlp_encoder.1} parent=1 // pred_region
      _
    $region81: #{mlp_encoder.1} parent=1 // pred_fallthru
      _
    // Predicated region
    $region82: #{mlp_encoder.1} parent=1 // pred_check
      _
    $region83: #{mlp_encoder.1} parent=1 // pred_check_branch
      %68 = sbr.rel (0) target = $region85
    $region84: #{mlp_encoder.1} parent=1 // pred_region
      _
    $region85: #{mlp_encoder.1} parent=1 // pred_fallthru
      _
    %v69 = vld [vmem:[%s0] sm:$0xff]
    %v70 = vld [vmem:[%s0 + $0x8] sm:$0xff]
    %v71 = vld [vmem:[%s1] sm:$0xff]
    %v72 = vld [vmem:[%s1 + $0x8] sm:$0xff]
    %v73 = vld [vmem:[%s2] sm:$0x1]
    %v74 = vld [vmem:[%s3] sm:$0xff]
    %v75 = vld [vmem:[%s3 + $0x8] sm:$0xff]
    %v76 = vld [vmem:[%s3 + $0x10] sm:$0xff]
    %v77 = vld [vmem:[%s3 + $0x18] sm:$0xff]
    %v78 = vld [vmem:[%s4] sm:$0x1]
    %v79 = vld [vmem:[%s5] sm:$0x1]
    %v80 = vld [vmem:[%s6] sm:$0x1]
    %v82 = vperm.slane %v73, 0
    %vm84 = vcmask 130048
    %v86 = vsel %vm84, %v69, 0
    %v89 = vsel %vm84, %v70, 0
    %91 = vmatpush.msra.mxu0 0.0
    %92 = vmatpush.msra.mxu0 0.0
    %93 = vmatpush.msra.mxu0 0.0
    %94 = vmatpush.msra.mxu0 0.0
    %95 = vmatpush.msra.mxu0 0.0
    %96 = vmatpush.msra.mxu0 0.0
    %97 = vmatpush.msra.mxu0 0.0
    %98 = vmatpush.msra.mxu0 0.0
    %99 = vmatpush.msra.mxu0 0.0
    %100 = vmatpush.msra.mxu0 0.0
    %101 = vmatpush.msra.mxu0 0.0
    %102 = vmatpush.msra.mxu0 0.0
    %103 = vmatpush.msra.mxu0 0.0
    %104 = vmatpush.msra.mxu0 0.0
    %105 = vmatpush.msra.mxu0 %v72
    %106 = vmatpush.msra.mxu0 %v71
    %107 = vmatmul.f32.gmra.mxu0 %v86
    %v108 = vpop.f32.mrf.mxu0
    %v109 = vadd.f32 %v82, %v108
    %110 = vmatmul.f32.gmra.mxu0 %v89
    %v111 = vpop.f32.mrf.mxu0
    %v112 = vadd.f32 %v82, %v111
    %113 = vdwg.mxu0
    %vm114 = vcmp.gt.f32.partialorder %v109, 0.0
    %vm115 = vcmp.gt.f32.partialorder %v112, 0.0
    %v116 = vmin.f32 %v109, 0.0
    %v117 = vmin.f32 %v112, 0.0
    %v118 = vmul.f32 %v116, 1.442695
    %v119 = vpow.pop %v118
    %v120 = vmul.f32 %v117, 1.442695
    %v121 = vpow.pop %v120
    %v122 = vsub.f32 %v119, 1.0
    %v123 = vsub.f32 %v121, 1.0
    %v124 = vsel %vm114, %v109, %v122
    %v125 = vsel %vm115, %v112, %v123
    %v127 = vperm.slane %v78, 0
    %vm129 = vcmask 261120
    %v131 = vsel %vm129, %v124, 0
    %v134 = vsel %vm129, %v125, 0
    %136 = vmatpush.msra.mxu0 0.0
    %137 = vmatpush.msra.mxu0 0.0
    %138 = vmatpush.msra.mxu0 0.0
    %139 = vmatpush.msra.mxu0 0.0
    %140 = vmatpush.msra.mxu0 0.0
    %141 = vmatpush.msra.mxu0 0.0
    %142 = vmatpush.msra.mxu0 0.0
    %143 = vmatpush.msra.mxu0 0.0
    %144 = vmatpush.msra.mxu0 0.0
    %145 = vmatpush.msra.mxu0 0.0
    %146 = vmatpush.msra.mxu0 0.0
    %147 = vmatpush.msra.mxu0 0.0
    %148 = vmatpush.msra.mxu0 %v77
    %149 = vmatpush.msra.mxu0 %v76
    %150 = vmatpush.msra.mxu0 %v75
    %151 = vmatpush.msra.mxu0 %v74
    %152 = vmatmul.f32.gmra.mxu0 %v131
    %v153 = vpop.f32.mrf.mxu0
    %v154 = vadd.f32 %v127, %v153
    %155 = vmatmul.f32.gmra.mxu0 %v134
    %v156 = vpop.f32.mrf.mxu0
    %v157 = vadd.f32 %v127, %v156
    %158 = vdwg.mxu0
    %vm159 = vcmp.gt.f32.partialorder %v154, 0.0
    %vm160 = vcmp.gt.f32.partialorder %v157, 0.0
    %v161 = vmin.f32 %v154, 0.0
    %v162 = vmin.f32 %v157, 0.0
    %v163 = vmul.f32 %v161, 1.442695
    %v164 = vpow.pop %v163
    %v165 = vmul.f32 %v162, 1.442695
    %v166 = vpow.pop %v165
    %v167 = vsub.f32 %v164, 1.0
    %v168 = vsub.f32 %v166, 1.0
    %v169 = vsel %vm159, %v154, %v167
    %v170 = vsel %vm160, %v157, %v168
    %v172 = vsel %vm84, 1.0, 0
    %174 = vmatpush.msra.mxu0 0.0
    %175 = vmatpush.msra.mxu0 0.0
    %176 = vmatpush.msra.mxu0 0.0
    %177 = vmatpush.msra.mxu0 0.0
    %178 = vmatpush.msra.mxu0 0.0
    %179 = vmatpush.msra.mxu0 0.0
    %180 = vmatpush.msra.mxu0 0.0
    %181 = vmatpush.msra.mxu0 0.0
    %182 = vmatpush.msra.mxu0 0.0
    %183 = vmatpush.msra.mxu0 0.0
    %184 = vmatpush.msra.mxu0 0.0
    %185 = vmatpush.msra.mxu0 0.0
    %186 = vmatpush.msra.mxu0 0.0
    %187 = vmatpush.msra.mxu0 0.0
    %188 = vmatpush.msra.mxu0 %v170
    %189 = vmatpush.msra.mxu0 %v169
    %190 = vmatmul.f32.gmra.mxu0 %v172
    %v191 = vpop.f32.mrf.mxu0
    %v192 = vadd.f32 0.0, %v191
    %193 = vdwg.mxu0
    %v194 = vmul.f32 %v169, %v169
    %v195 = vmul.f32 %v170, %v170
    %196 = vmatpush.msra.mxu0 0.0
    %197 = vmatpush.msra.mxu0 0.0
    %198 = vmatpush.msra.mxu0 0.0
    %199 = vmatpush.msra.mxu0 0.0
    %200 = vmatpush.msra.mxu0 0.0
    %201 = vmatpush.msra.mxu0 0.0
    %202 = vmatpush.msra.mxu0 0.0
    %203 = vmatpush.msra.mxu0 0.0
    %204 = vmatpush.msra.mxu0 0.0
    %205 = vmatpush.msra.mxu0 0.0
    %206 = vmatpush.msra.mxu0 0.0
    %207 = vmatpush.msra.mxu0 0.0
    %208 = vmatpush.msra.mxu0 0.0
    %209 = vmatpush.msra.mxu0 0.0
    %210 = vmatpush.msra.mxu0 %v195
    %211 = vmatpush.msra.mxu0 %v194
    %212 = vmatmul.f32.gmra.mxu0 %v172
    %v213 = vpop.f32.mrf.mxu0
    %v214 = vadd.f32 0.0, %v213
    %215 = vdwg.mxu0
    %v216 = vmul.f32 %v192, 0.0625
    %v217 = vmul.f32 %v214, 0.0625
    %v218 = vmul.f32 %v216, %v216
    %v219 = vsub.f32 %v217, %v218
    %v220 = vmax.f32 %v219, 0.0
    %v221 = vperm.slane %v216, 0
    %v222 = vsub.f32 %v169, %v221
    %v223 = vsub.f32 %v170, %v221
    %v224 = vadd.f32 %v220, 1e-05
    %v225 = vrsqrt.pop %v224
    %v226 = vmul.f32 %v225, %v224
    %v227 = vmul.f32 %v226, %v225
    %v228 = vmul.f32 0.5, %v227
    %v229 = vsub.f32 1.5, %v228
    %v230 = vmul.f32 %v225, %v229
    %vm231 = vweird.f32 %v224
    %vm232 = vweird.f32 %v225
    %vm233 = vmor %vm231, %vm232
    %v234 = vsel %vm233, %v225, %v230
    %v235 = vperm.slane %v234, 0
    %v236 = vmul.f32 %v222, %v235
    %v237 = vmul.f32 %v223, %v235
    %v239 = vperm.slane %v79, 0
    %v241 = vmul.f32 %v236, %v239
    %v242 = vmul.f32 %v237, %v239
    %v244 = vperm.slane %v80, 0
    %v246 = vadd.f32 %v241, %v244
    %v247 = vadd.f32 %v242, %v244
    %v248 = vld [vmem:[%s7] sm:$0xff]
    %v249 = vld [vmem:[%s7 + $0x8] sm:$0xff]
    %v250 = vld [vmem:[%s7 + $0x10] sm:$0xff]
    %v251 = vld [vmem:[%s7 + $0x18] sm:$0xff]
    %v252 = vld [vmem:[%s8] sm:$0x1]
    %v253 = vld [vmem:[%s9] sm:$0xff]
    %v254 = vld [vmem:[%s9 + $0x8] sm:$0xff]
    %v255 = vld [vmem:[%s9 + $0x10] sm:$0xff]
    %v256 = vld [vmem:[%s9 + $0x18] sm:$0xff]
    %v257 = vld [vmem:[%s10] sm:$0x1]
    %v258 = vld [vmem:[%s11] sm:$0x1]
    %v259 = vld [vmem:[%s12] sm:$0x1]
    %v261 = vperm.slane %v252, 0
    %v264 = vsel %vm129, %v246, 0
    %v267 = vsel %vm129, %v247, 0
    %269 = vmatpush.msra.mxu0 0.0
    %270 = vmatpush.msra.mxu0 0.0
    %271 = vmatpush.msra.mxu0 0.0
    %272 = vmatpush.msra.mxu0 0.0
    %273 = vmatpush.msra.mxu0 0.0
    %274 = vmatpush.msra.mxu0 0.0
    %275 = vmatpush.msra.mxu0 0.0
    %276 = vmatpush.msra.mxu0 0.0
    %277 = vmatpush.msra.mxu0 0.0
    %278 = vmatpush.msra.mxu0 0.0
    %279 = vmatpush.msra.mxu0 0.0
    %280 = vmatpush.msra.mxu0 0.0
    %281 = vmatpush.msra.mxu0 %v251
    %282 = vmatpush.msra.mxu0 %v250
    %283 = vmatpush.msra.mxu0 %v249
    %284 = vmatpush.msra.mxu0 %v248
    %285 = vmatmul.f32.gmra.mxu0 %v264
    %v286 = vpop.f32.mrf.mxu0
    %v287 = vadd.f32 %v261, %v286
    %288 = vmatmul.f32.gmra.mxu0 %v267
    %v289 = vpop.f32.mrf.mxu0
    %v290 = vadd.f32 %v261, %v289
    %291 = vdwg.mxu0
    %vm292 = vcmp.gt.f32.partialorder %v287, 0.0
    %vm293 = vcmp.gt.f32.partialorder %v290, 0.0
    %v294 = vmin.f32 %v287, 0.0
    %v295 = vmin.f32 %v290, 0.0
    %v296 = vmul.f32 %v294, 1.442695
    %v297 = vpow.pop %v296
    %v298 = vmul.f32 %v295, 1.442695
    %v299 = vpow.pop %v298
    %v300 = vsub.f32 %v297, 1.0
    %v301 = vsub.f32 %v299, 1.0
    %v302 = vsel %vm292, %v287, %v300
    %v303 = vsel %vm293, %v290, %v301
    %v305 = vperm.slane %v257, 0
    %v308 = vsel %vm129, %v302, 0
    %v311 = vsel %vm129, %v303, 0
    %313 = vmatpush.msra.mxu0 0.0
    %314 = vmatpush.msra.mxu0 0.0
    %315 = vmatpush.msra.mxu0 0.0
    %316 = vmatpush.msra.mxu0 0.0
    %317 = vmatpush.msra.mxu0 0.0
    %318 = vmatpush.msra.mxu0 0.0
    %319 = vmatpush.msra.mxu0 0.0
    %320 = vmatpush.msra.mxu0 0.0
    %321 = vmatpush.msra.mxu0 0.0
    %322 = vmatpush.msra.mxu0 0.0
    %323 = vmatpush.msra.mxu0 0.0
    %324 = vmatpush.msra.mxu0 0.0
    %325 = vmatpush.msra.mxu0 %v256
    %326 = vmatpush.msra.mxu0 %v255
    %327 = vmatpush.msra.mxu0 %v254
    %328 = vmatpush.msra.mxu0 %v253
    %329 = vmatmul.f32.gmra.mxu0 %v308
    %v330 = vpop.f32.mrf.mxu0
    %v331 = vadd.f32 %v305, %v330
    %332 = vmatmul.f32.gmra.mxu0 %v311
    %v333 = vpop.f32.mrf.mxu0
    %v334 = vadd.f32 %v305, %v333
    %335 = vdwg.mxu0
    %vm336 = vcmp.gt.f32.partialorder %v331, 0.0
    %vm337 = vcmp.gt.f32.partialorder %v334, 0.0
    %v338 = vmin.f32 %v331, 0.0
    %v339 = vmin.f32 %v334, 0.0
    %v340 = vmul.f32 %v338, 1.442695
    %v341 = vpow.pop %v340
    %v342 = vmul.f32 %v339, 1.442695
    %v343 = vpow.pop %v342
    %v344 = vsub.f32 %v341, 1.0
    %v345 = vsub.f32 %v343, 1.0
    %v346 = vsel %vm336, %v331, %v344
    %v347 = vsel %vm337, %v334, %v345
    %348 = vmatpush.msra.mxu0 0.0
    %349 = vmatpush.msra.mxu0 0.0
    %350 = vmatpush.msra.mxu0 0.0
    %351 = vmatpush.msra.mxu0 0.0
    %352 = vmatpush.msra.mxu0 0.0
    %353 = vmatpush.msra.mxu0 0.0
    %354 = vmatpush.msra.mxu0 0.0
    %355 = vmatpush.msra.mxu0 0.0
    %356 = vmatpush.msra.mxu0 0.0
    %357 = vmatpush.msra.mxu0 0.0
    %358 = vmatpush.msra.mxu0 0.0
    %359 = vmatpush.msra.mxu0 0.0
    %360 = vmatpush.msra.mxu0 0.0
    %361 = vmatpush.msra.mxu0 0.0
    %362 = vmatpush.msra.mxu0 %v347
    %363 = vmatpush.msra.mxu0 %v346
    %364 = vmatmul.f32.gmra.mxu0 %v172
    %v365 = vpop.f32.mrf.mxu0
    %v366 = vadd.f32 0.0, %v365
    %367 = vdwg.mxu0
    %v368 = vmul.f32 %v346, %v346
    %v369 = vmul.f32 %v347, %v347
    %370 = vmatpush.msra.mxu0 0.0
    %371 = vmatpush.msra.mxu0 0.0
    %372 = vmatpush.msra.mxu0 0.0
    %373 = vmatpush.msra.mxu0 0.0
    %374 = vmatpush.msra.mxu0 0.0
    %375 = vmatpush.msra.mxu0 0.0
    %376 = vmatpush.msra.mxu0 0.0
    %377 = vmatpush.msra.mxu0 0.0
    %378 = vmatpush.msra.mxu0 0.0
    %379 = vmatpush.msra.mxu0 0.0
    %380 = vmatpush.msra.mxu0 0.0
    %381 = vmatpush.msra.mxu0 0.0
    %382 = vmatpush.msra.mxu0 0.0
    %383 = vmatpush.msra.mxu0 0.0
    %384 = vmatpush.msra.mxu0 %v369
    %385 = vmatpush.msra.mxu0 %v368
    %386 = vmatmul.f32.gmra.mxu0 %v172
    %v387 = vpop.f32.mrf.mxu0
    %v388 = vadd.f32 0.0, %v387
    %389 = vdwg.mxu0
    %v390 = vmul.f32 %v366, 0.0625
    %v391 = vmul.f32 %v388, 0.0625
    %v392 = vmul.f32 %v390, %v390
    %v393 = vsub.f32 %v391, %v392
    %v394 = vmax.f32 %v393, 0.0
    %v395 = vperm.slane %v390, 0
    %v396 = vsub.f32 %v346, %v395
    %v397 = vsub.f32 %v347, %v395
    %v398 = vadd.f32 %v394, 1e-05
    %v399 = vrsqrt.pop %v398
    %v400 = vmul.f32 %v399, %v398
    %v401 = vmul.f32 %v400, %v399
    %v402 = vmul.f32 0.5, %v401
    %v403 = vsub.f32 1.5, %v402
    %v404 = vmul.f32 %v399, %v403
    %vm405 = vweird.f32 %v398
    %vm406 = vweird.f32 %v399
    %vm407 = vmor %vm405, %vm406
    %v408 = vsel %vm407, %v399, %v404
    %v409 = vperm.slane %v408, 0
    %v410 = vmul.f32 %v396, %v409
    %v411 = vmul.f32 %v397, %v409
    %v413 = vperm.slane %v258, 0
    %v415 = vmul.f32 %v410, %v413
    %v416 = vmul.f32 %v411, %v413
    %v418 = vperm.slane %v259, 0
    %v420 = vadd.f32 %v415, %v418
    %v421 = vadd.f32 %v416, %v418
    %v422 = vld [vmem:[%s13] sm:$0xff]
    %v423 = vld [vmem:[%s13 + $0x8] sm:$0xff]
    %v424 = vld [vmem:[%s13 + $0x10] sm:$0xff]
    %v425 = vld [vmem:[%s13 + $0x18] sm:$0xff]
    %v426 = vld [vmem:[%s14] sm:$0x1]
    %v427 = vld [vmem:[%s15] sm:$0xff]
    %v428 = vld [vmem:[%s15 + $0x8] sm:$0xff]
    %v429 = vld [vmem:[%s15 + $0x10] sm:$0xff]
    %v430 = vld [vmem:[%s15 + $0x18] sm:$0xff]
    %v431 = vld [vmem:[%s16] sm:$0x1]
    %v432 = vld [vmem:[%s17] sm:$0x1]
    %v433 = vld [vmem:[%s18] sm:$0x1]
    %v435 = vperm.slane %v426, 0
    %v438 = vsel %vm129, %v420, 0
    %v441 = vsel %vm129, %v421, 0
    %443 = vmatpush.msra.mxu0 0.0
    %444 = vmatpush.msra.mxu0 0.0
    %445 = vmatpush.msra.mxu0 0.0
    %446 = vmatpush.msra.mxu0 0.0
    %447 = vmatpush.msra.mxu0 0.0
    %448 = vmatpush.msra.mxu0 0.0
    %449 = vmatpush.msra.mxu0 0.0
    %450 = vmatpush.msra.mxu0 0.0
    %451 = vmatpush.msra.mxu0 0.0
    %452 = vmatpush.msra.mxu0 0.0
    %453 = vmatpush.msra.mxu0 0.0
    %454 = vmatpush.msra.mxu0 0.0
    %455 = vmatpush.msra.mxu0 %v425
    %456 = vmatpush.msra.mxu0 %v424
    %457 = vmatpush.msra.mxu0 %v423
    %458 = vmatpush.msra.mxu0 %v422
    %459 = vmatmul.f32.gmra.mxu0 %v438
    %v460 = vpop.f32.mrf.mxu0
    %v461 = vadd.f32 %v435, %v460
    %462 = vmatmul.f32.gmra.mxu0 %v441
    %v463 = vpop.f32.mrf.mxu0
    %v464 = vadd.f32 %v435, %v463
    %465 = vdwg.mxu0
    %vm466 = vcmp.gt.f32.partialorder %v461, 0.0
    %vm467 = vcmp.gt.f32.partialorder %v464, 0.0
    %v468 = vmin.f32 %v461, 0.0
    %v469 = vmin.f32 %v464, 0.0
    %v470 = vmul.f32 %v468, 1.442695
    %v471 = vpow.pop %v470
    %v472 = vmul.f32 %v469, 1.442695
    %v473 = vpow.pop %v472
    %v474 = vsub.f32 %v471, 1.0
    %v475 = vsub.f32 %v473, 1.0
    %v476 = vsel %vm466, %v461, %v474
    %v477 = vsel %vm467, %v464, %v475
    %v479 = vperm.slane %v431, 0
    %v482 = vsel %vm129, %v476, 0
    %v485 = vsel %vm129, %v477, 0
    %487 = vmatpush.msra.mxu0 0.0
    %488 = vmatpush.msra.mxu0 0.0
    %489 = vmatpush.msra.mxu0 0.0
    %490 = vmatpush.msra.mxu0 0.0
    %491 = vmatpush.msra.mxu0 0.0
    %492 = vmatpush.msra.mxu0 0.0
    %493 = vmatpush.msra.mxu0 0.0
    %494 = vmatpush.msra.mxu0 0.0
    %495 = vmatpush.msra.mxu0 0.0
    %496 = vmatpush.msra.mxu0 0.0
    %497 = vmatpush.msra.mxu0 0.0
    %498 = vmatpush.msra.mxu0 0.0
    %499 = vmatpush.msra.mxu0 %v430
    %500 = vmatpush.msra.mxu0 %v429
    %501 = vmatpush.msra.mxu0 %v428
    %502 = vmatpush.msra.mxu0 %v427
    %503 = vmatmul.f32.gmra.mxu0 %v482
    %v504 = vpop.f32.mrf.mxu0
    %v505 = vadd.f32 %v479, %v504
    %506 = vmatmul.f32.gmra.mxu0 %v485
    %v507 = vpop.f32.mrf.mxu0
    %v508 = vadd.f32 %v479, %v507
    %509 = vdwg.mxu0
    %vm510 = vcmp.gt.f32.partialorder %v505, 0.0
    %vm511 = vcmp.gt.f32.partialorder %v508, 0.0
    %v512 = vmin.f32 %v505, 0.0
    %v513 = vmin.f32 %v508, 0.0
    %v514 = vmul.f32 %v512, 1.442695
    %v515 = vpow.pop %v514
    %v516 = vmul.f32 %v513, 1.442695
    %v517 = vpow.pop %v516
    %v518 = vsub.f32 %v515, 1.0
    %v519 = vsub.f32 %v517, 1.0
    %v520 = vsel %vm510, %v505, %v518
    %v521 = vsel %vm511, %v508, %v519
    %522 = vmatpush.msra.mxu0 0.0
    %523 = vmatpush.msra.mxu0 0.0
    %524 = vmatpush.msra.mxu0 0.0
    %525 = vmatpush.msra.mxu0 0.0
    %526 = vmatpush.msra.mxu0 0.0
    %527 = vmatpush.msra.mxu0 0.0
    %528 = vmatpush.msra.mxu0 0.0
    %529 = vmatpush.msra.mxu0 0.0
    %530 = vmatpush.msra.mxu0 0.0
    %531 = vmatpush.msra.mxu0 0.0
    %532 = vmatpush.msra.mxu0 0.0
    %533 = vmatpush.msra.mxu0 0.0
    %534 = vmatpush.msra.mxu0 0.0
    %535 = vmatpush.msra.mxu0 0.0
    %536 = vmatpush.msra.mxu0 %v521
    %537 = vmatpush.msra.mxu0 %v520
    %538 = vmatmul.f32.gmra.mxu0 %v172
    %v539 = vpop.f32.mrf.mxu0
    %v540 = vadd.f32 0.0, %v539
    %541 = vdwg.mxu0
    %v542 = vmul.f32 %v520, %v520
    %v543 = vmul.f32 %v521, %v521
    %544 = vmatpush.msra.mxu0 0.0
    %545 = vmatpush.msra.mxu0 0.0
    %546 = vmatpush.msra.mxu0 0.0
    %547 = vmatpush.msra.mxu0 0.0
    %548 = vmatpush.msra.mxu0 0.0
    %549 = vmatpush.msra.mxu0 0.0
    %550 = vmatpush.msra.mxu0 0.0
    %551 = vmatpush.msra.mxu0 0.0
    %552 = vmatpush.msra.mxu0 0.0
    %553 = vmatpush.msra.mxu0 0.0
    %554 = vmatpush.msra.mxu0 0.0
    %555 = vmatpush.msra.mxu0 0.0
    %556 = vmatpush.msra.mxu0 0.0
    %557 = vmatpush.msra.mxu0 0.0
    %558 = vmatpush.msra.mxu0 %v543
    %559 = vmatpush.msra.mxu0 %v542
    %560 = vmatmul.f32.gmra.mxu0 %v172
    %v561 = vpop.f32.mrf.mxu0
    %v562 = vadd.f32 0.0, %v561
    %563 = vdwg.mxu0
    %v564 = vmul.f32 %v540, 0.0625
    %v565 = vmul.f32 %v562, 0.0625
    %v566 = vmul.f32 %v564, %v564
    %v567 = vsub.f32 %v565, %v566
    %v568 = vmax.f32 %v567, 0.0
    %v569 = vperm.slane %v564, 0
    %v570 = vsub.f32 %v520, %v569
    %v571 = vsub.f32 %v521, %v569
    %v572 = vadd.f32 %v568, 1e-05
    %v573 = vrsqrt.pop %v572
    %v574 = vmul.f32 %v573, %v572
    %v575 = vmul.f32 %v574, %v573
    %v576 = vmul.f32 0.5, %v575
    %v577 = vsub.f32 1.5, %v576
    %v578 = vmul.f32 %v573, %v577
    %vm579 = vweird.f32 %v572
    %vm580 = vweird.f32 %v573
    %vm581 = vmor %vm579, %vm580
    %v582 = vsel %vm581, %v573, %v578
    %v583 = vperm.slane %v582, 0
    %v584 = vmul.f32 %v570, %v583
    %v585 = vmul.f32 %v571, %v583
    %v587 = vperm.slane %v432, 0
    %v589 = vmul.f32 %v584, %v587
    %v590 = vmul.f32 %v585, %v587
    %v592 = vperm.slane %v433, 0
    %v594 = vadd.f32 %v589, %v592
    %v595 = vadd.f32 %v590, %v592
    %v596 = vld [vmem:[%s19] sm:$0xff]
    %v597 = vld [vmem:[%s19 + $0x8] sm:$0xff]
    %v598 = vld [vmem:[%s19 + $0x10] sm:$0xff]
    %v599 = vld [vmem:[%s19 + $0x18] sm:$0xff]
    %v600 = vld [vmem:[%s20] sm:$0x1]
    %v602 = vperm.slane %v600, 0
    %v605 = vsel %vm129, %v594, 0
    %v608 = vsel %vm129, %v595, 0
    %610 = vmatpush.msra.mxu0 0.0
    %611 = vmatpush.msra.mxu0 0.0
    %612 = vmatpush.msra.mxu0 0.0
    %613 = vmatpush.msra.mxu0 0.0
    %614 = vmatpush.msra.mxu0 0.0
    %615 = vmatpush.msra.mxu0 0.0
    %616 = vmatpush.msra.mxu0 0.0
    %617 = vmatpush.msra.mxu0 0.0
    %618 = vmatpush.msra.mxu0 0.0
    %619 = vmatpush.msra.mxu0 0.0
    %620 = vmatpush.msra.mxu0 0.0
    %621 = vmatpush.msra.mxu0 0.0
    %622 = vmatpush.msra.mxu0 %v599
    %623 = vmatpush.msra.mxu0 %v598
    %624 = vmatpush.msra.mxu0 %v597
    %625 = vmatpush.msra.mxu0 %v596
    %626 = vmatmul.f32.gmra.mxu0 %v605
    %v627 = vpop.f32.mrf.mxu0
    %v628 = vadd.f32 %v602, %v627
    %629 = vmatmul.f32.gmra.mxu0 %v608
    %v630 = vpop.f32.mrf.mxu0
    %v631 = vadd.f32 %v602, %v630
    %632 = vdwg.mxu0
    %vm633 = vcmask 64512
    %v635 = vsel %vm633, %v628, 0
    %637 = vmatpush.xpose.msra.mxu0 0.0
    %638 = vmatpush.xpose.msra.mxu0 0.0
    %639 = vmatpush.xpose.msra.mxu0 0.0
    %640 = vmatpush.xpose.msra.mxu0 0.0
    %641 = vmatpush.xpose.msra.mxu0 0.0
    %642 = vmatpush.xpose.msra.mxu0 0.0
    %643 = vmatpush.xpose.msra.mxu0 0.0
    %644 = vmatpush.xpose.msra.mxu0 0.0
    %645 = vmatpush.xpose.msra.mxu0 0.0
    %646 = vmatpush.xpose.msra.mxu0 0.0
    %647 = vmatpush.xpose.msra.mxu0 0.0
    %648 = vmatpush.xpose.msra.mxu0 0.0
    %649 = vmatpush.xpose.msra.mxu0 0.0
    %650 = vmatpush.xpose.msra.mxu0 0.0
    %651 = vmatpush.xpose.msra.mxu0 0.0
    %652 = vmatpush.xpose.msra.mxu0 %v635
    %653 = vmatmul.f32.gmra.mxu0 %v635
    %v654 = vpop.f32.mrf.mxu0
    %v655 = vadd.f32 0.0, %v654
    %656 = vdwg.mxu0
    %v658 = vsel %vm633, %v631, 0
    %660 = vmatpush.xpose.msra.mxu0 0.0
    %661 = vmatpush.xpose.msra.mxu0 0.0
    %662 = vmatpush.xpose.msra.mxu0 0.0
    %663 = vmatpush.xpose.msra.mxu0 0.0
    %664 = vmatpush.xpose.msra.mxu0 0.0
    %665 = vmatpush.xpose.msra.mxu0 0.0
    %666 = vmatpush.xpose.msra.mxu0 0.0
    %667 = vmatpush.xpose.msra.mxu0 0.0
    %668 = vmatpush.xpose.msra.mxu0 0.0
    %669 = vmatpush.xpose.msra.mxu0 0.0
    %670 = vmatpush.xpose.msra.mxu0 0.0
    %671 = vmatpush.xpose.msra.mxu0 0.0
    %672 = vmatpush.xpose.msra.mxu0 0.0
    %673 = vmatpush.xpose.msra.mxu0 0.0
    %674 = vmatpush.xpose.msra.mxu0 0.0
    %675 = vmatpush.xpose.msra.mxu0 %v658
    %676 = vmatmul.f32.gmra.mxu0 %v658
    %v677 = vpop.f32.mrf.mxu0
    %v678 = vadd.f32 0.0, %v677
    %679 = vdwg.mxu0
    %v680 = vxor.u32 %v655, 2147483648
    %v681 = vxor.u32 %v678, 2147483648
    %v682 = vmul.f32 %v680, 1.442695
    %v683 = vpow.pop %v682
    %v684 = vmul.f32 %v681, 1.442695
    %v685 = vpow.pop %v684
    %v686 = vadd.f32 %v683, 1.0
    %v687 = vadd.f32 %v685, 1.0
    %v688 = vrcp.pop %v686
    %v689 = vmul.f32 %v686, %v688
    %v690 = vsub.f32 1.0, %v689
    %v691 = vmul.f32 %v688, %v690
    %v692 = vadd.f32 %v688, %v691
    %vm693 = vweird.f32 %v686
    %vm694 = vweird.f32 %v688
    %vm695 = vmor %vm693, %vm694
    %v696 = vsel %vm695, %v688, %v692
    %v697 = vand.u32 2147483647, %v686
    %vm698 = vcmp.eq.f32.partialorder %v697, 8.507059e+37
    %v699 = vand.u32 %v686, 2147483648
    %v700 = vor.u32 1.1754944e-38, %v699
    %v701 = vsel %vm698, %v700, %v696
    %v702 = vmul.f32 1.0, %v701
    %v703 = vrcp.pop %v687
    %v704 = vmul.f32 %v687, %v703
    %v705 = vsub.f32 1.0, %v704
    %v706 = vmul.f32 %v703, %v705
    %v707 = vadd.f32 %v703, %v706
    %vm708 = vweird.f32 %v687
    %vm709 = vweird.f32 %v703
    %vm710 = vmor %vm708, %vm709
    %v711 = vsel %vm710, %v703, %v707
    %v712 = vand.u32 2147483647, %v687
    %vm713 = vcmp.eq.f32.partialorder %v712, 8.507059e+37
    %v714 = vand.u32 %v687, 2147483648
    %v715 = vor.u32 1.1754944e-38, %v714
    %v716 = vsel %vm713, %v715, %v711
    %v717 = vmul.f32 1.0, %v716
    %718 = vst.msk [vmem:[#allocation2] sm:$0xff] %vm633, %v702
    %719 = vst.msk [vmem:[#allocation2 + $0x8] sm:$0xff] %vm633, %v717
    // Predicated region
    $region86: #{mlp_encoder.1} parent=1 // pred_check
      _
    $region87: #{mlp_encoder.1} parent=1 // pred_check_branch
      %721 = sbr.rel (0) target = $region89
    $region88: #{mlp_encoder.1} parent=1 // pred_region
      %723 = vsyncadd [#allocation3], 0
      %s724 = sshll.u32 [#allocation2], 4
      %s725 = int_to_ptr.vmem [resolvable:$true] %s724
      %s726 = sshll.u32 %s21, 4
      %s727 = int_to_ptr.hbm [resolvable:$true] %s726
      %732 = dma.vmem_to_hbm [thread:$0]  %s725, 256, %s727, [#allocation3], 128, 128, 8
    $region89: #{mlp_encoder.1} parent=1 // pred_fallthru
      _
    // Predicated region
    $region90: #{mlp_encoder.1} parent=1 // pred_check
      _
    $region91: #{mlp_encoder.1} parent=1 // pred_check_branch
      %734 = sbr.rel (0) target = $region93
    $region92: #{mlp_encoder.1} parent=1 // pred_region
      %736 = dma.done [#allocation3], 256
    $region93: #{mlp_encoder.1} parent=1 // pred_fallthru
      _
    %737 = vsyncpa [#allocation3], 1

</llo_original>
